<compile_context>
chip_gen: v7x
topology: tpu7x:2x2x1
jax: 0.10.0
libtpu: 0.0.40
codegen_flags: <defaults>
</compile_context>

<pallas_src>
import math

import jax
import jax.numpy as jnp
from jax.experimental import pallas as pl
from jax.experimental.pallas import tpu as pltpu

_LANE = 128
_STORE_LOOP_CAP = 64  # keep the unrolled per-batch store loop modest


def _cdiv(a, b):
    return -(-a // b)


def _round_up(v, m):
    return ((v + m - 1) // m) * m


def _tpu_budgets():
    """(tile_budget_bytes, lane_cap, vmem_limit_cap), generation-aware."""
    try:
        vmem = int(pltpu.get_tpu_info().vmem_capacity_bytes)
    except Exception:
        vmem = 128 * 1024 * 1024
    if vmem <= 96 * 1024 * 1024:            # v7x-class: 64 MiB per TensorCore
        return 12 << 20, 1024, 40 << 20
    return 24 << 20, 2048, 64 << 20         # v5e / v6e: 128 MiB


def _pick_batch_tile(batch, channels, seq_len, pred_len, itemsize, budget,
                     lane_cap, unit, out_block_bytes):
    """Batch tile TB for the native-output mode (input tile is TN = TB*C lanes)."""
    if batch <= unit:
        return batch                        # one block; TN == full lane dim
    per_batch = (2 * seq_len * channels * itemsize   # x tile, double-buffered
                 + 2 * out_block_bytes                # lane-padded out tile, x2
                 + pred_len * channels * 4)           # in-kernel f32 result
    tb = max(budget // per_batch, 1)
    tb = min(tb, max(lane_cap // channels, 1), max(_STORE_LOOP_CAP, unit))
    tb = max(unit, (tb // unit) * unit)
    # v7x megacore: keep an even (>=2) block count on the "parallel" axis.
    nblocks = _cdiv(batch, tb)
    if nblocks < 2 or nblocks % 2:
        nblocks = max(2, nblocks + (nblocks % 2))
        tb = max(unit, _round_up(_cdiv(batch, nblocks), unit))
    return tb


def _pick_col_tile(n_cols, seq_len, pred_len, itemsize, budget, lane_cap):
    """Column tile TN (multiple of 128) for the lane-dense output fallback."""
    n_full = _round_up(max(n_cols, 1), _LANE)
    per_col = 2 * (seq_len + pred_len) * itemsize + 4 * pred_len
    tn = max(budget // per_col, _LANE)
    tn = min((tn // _LANE) * _LANE, lane_cap, n_full)
    nblocks = _cdiv(n_cols, tn)
    if n_full >= 2 * _LANE and (nblocks < 2 or nblocks % 2):
        nblocks = max(2, nblocks + (nblocks % 2))
        tn = max(_LANE, _round_up(_cdiv(n_cols, nblocks), _LANE))
    return tn


def _nlinear_kernel(x_ref, w_ref, b_ref, c_ref, o_ref):
    # x_ref: (L, TN) lane-dense, time-major; column j is one (batch, channel) pair.
    # w_ref: (P, L)  shared Linear weight over the time axis.
    # b_ref: (P, 1)  bias (f32).
    # c_ref: (P, 1)  folded centering coefficient 1 - rowsum(W) (f32).
    # o_ref: (TB, P, C) native output block, or (P, TN) lane-dense block.
    x = x_ref[...]                                     # streams straight to MXU
    seq_last = x[-1:, :]                               # (1, TN) last time step
    y = jnp.dot(w_ref[...], x, preferred_element_type=jnp.float32)   # (P, TN)
    y = (y + b_ref[...] + c_ref[...] * seq_last).astype(o_ref.dtype)
    if len(o_ref.shape) == 2:
        o_ref[...] = y                                 # lane-dense (P, TN) store
    else:
        tb, _, c = o_ref.shape                         # native (TB, P, C) store
        for bi in range(tb):                           # static unroll; lane slices
            o_ref[bi] = y[:, bi * c:(bi + 1) * c]


def nlinear_forward_pallas(x, weight, bias):
    """x: [B, L, C], weight: [P, L], bias: [P]  ->  [B, P, C] (individual=False)."""
    batch, seq_len, channels = x.shape
    pred_len = weight.shape[0]
    n_cols = batch * channels
    dtype = x.dtype
    itemsize = jnp.dtype(dtype).itemsize
    budget, lane_cap, vmem_cap = _tpu_budgets()

    # Single host relayout: lane-dense fold [B, L, C] -> [L, B*C] (column = b*C + c).
    x2d = jnp.transpose(x, (1, 0, 2)).reshape(seq_len, n_cols)

    # Weight stays in the activation dtype (bf16 stays bf16 -> MXU fast path);
    # accumulation is f32 inside the kernel.
    w = weight.astype(dtype)
    b2d = bias.reshape(pred_len, 1).astype(jnp.float32)
    cfold = (1.0 - jnp.sum(weight.astype(jnp.float32), axis=1)).reshape(pred_len, 1)

    unit = _LANE // math.gcd(channels, _LANE)   # smallest TB with TB*C % 128 == 0
    min_tb = batch if batch <= unit else unit
    # A native (TB, P, C) block pads C up to a 128-lane row in VMEM; only write
    # natively when that padding is cheap, else use the lane-dense fallback.
    out_block_bytes = _round_up(pred_len, 8) * _round_up(channels, _LANE) * itemsize
    native_out = 2 * min_tb * out_block_bytes <= budget

    if native_out:
        tb = _pick_batch_tile(batch, channels, seq_len, pred_len, itemsize,
                              budget, lane_cap, unit, out_block_bytes)
        tn = tb * channels
        grid = (_cdiv(batch, tb),)
        out_specs = pl.BlockSpec((tb, pred_len, channels), lambda j: (j, 0, 0))
        out_shape = jax.ShapeDtypeStruct((batch, pred_len, channels), dtype)
        out_tile_bytes = tb * out_block_bytes
    else:
        tn = _pick_col_tile(n_cols, seq_len, pred_len, itemsize, budget, lane_cap)
        grid = (_cdiv(n_cols, tn),)
        out_specs = pl.BlockSpec((pred_len, tn), lambda j: (0, j))
        out_shape = jax.ShapeDtypeStruct((pred_len, n_cols), dtype)
        out_tile_bytes = pred_len * tn * itemsize

    # Grid-invariant operands: single-buffered (constant index_map).
    invariant_specs = [
        pl.BlockSpec((pred_len, seq_len), lambda j: (0, 0),
                     pipeline_mode=pl.Buffered(1)),
        pl.BlockSpec((pred_len, 1), lambda j: (0, 0),
                     pipeline_mode=pl.Buffered(1)),
        pl.BlockSpec((pred_len, 1), lambda j: (0, 0),
                     pipeline_mode=pl.Buffered(1)),
    ]

    vmem_needed = (2 * seq_len * tn * itemsize            # x tiles (double-buffered)
                   + 2 * out_tile_bytes                    # out tiles
                   + pred_len * seq_len * itemsize         # weight (single-buffered)
                   + 8 * pred_len                          # bias + cfold
                   + pred_len * tn * 4                     # in-kernel f32 result
                   + (2 << 20))                            # slack
    vmem_limit = int(min(max(vmem_needed, 16 << 20), vmem_cap))

    out = pl.pallas_call(
        _nlinear_kernel,
        out_shape=out_shape,
        grid_spec=pltpu.PrefetchScalarGridSpec(
            num_scalar_prefetch=0,
            grid=grid,
            in_specs=[pl.BlockSpec((seq_len, tn), lambda j: (0, j))] + invariant_specs,
            out_specs=out_specs,
        ),
        compiler_params=pltpu.CompilerParams(
            dimension_semantics=("parallel",),
            vmem_limit_bytes=vmem_limit,
        ),
        cost_estimate=pl.CostEstimate(
            flops=2 * pred_len * seq_len * n_cols,
            transcendentals=0,
            bytes_accessed=itemsize * (seq_len * n_cols + pred_len * n_cols
                                       + pred_len * seq_len) + 8 * pred_len,
        ),
    )(x2d, w, b2d, cfold)

    if native_out:
        return out                                         # already [B, P, C]
    # Lane-dense fallback: undo the column fold on the host (one XLA transpose).
    return jnp.transpose(out.reshape(pred_len, batch, channels), (1, 0, 2))


def nlinear_reference(x, weight, bias):
    """Pure-JAX reference mirroring the PyTorch forward (individual=False)."""
    seq_last = x[:, -1:, :]
    xc = x - seq_last
    y = jnp.einsum("blc,pl->bpc", xc, weight) + bias[None, :, None]
    return y + seq_last


# Below this many (batch*channel) columns the launch/DMA overhead of the kernel
# dwarfs the compute; let XLA's fused einsum handle toy sizes.
_PALLAS_MIN_COLS = 256


def nlinear_forward(x, weight, bias):
    """Dispatching entry point: toy sizes -> einsum, real sizes -> Pallas."""
    b, _, c = x.shape
    if b * c < _PALLAS_MIN_COLS:
        return nlinear_reference(x, weight, bias)
    return nlinear_forward_pallas(x, weight, bias)


if __name__ == "__main__":
    key = jax.random.PRNGKey(0)

    def _make(b, l, p, c, k):
        kx, kw, kb = jax.random.split(k, 3)
        bound = 1.0 / (l ** 0.5)
        x = jax.random.normal(kx, (b, l, c), dtype=jnp.float32)
        w = jax.random.uniform(kw, (p, l), minval=-bound, maxval=bound,
                               dtype=jnp.float32)
        bias = jax.random.uniform(kb, (p,), minval=-bound, maxval=bound,
                                  dtype=jnp.float32)
        return x, w, bias

    k1, k2, k3 = jax.random.split(key, 3)

    # Shapes consistent with the module: lookback=8, predict=4, 4 channels, batch=2.
    x1, w1, b1 = _make(2, 8, 4, 4, k1)
    out1 = jax.block_until_ready(nlinear_forward_pallas(x1, w1, b1))
    ref1 = nlinear_reference(x1, w1, b1)
    assert out1.shape == (2, 4, 4)
    assert jnp.allclose(out1, ref1, atol=1e-5, rtol=1e-5), "mismatch vs reference (1)"

    # Non-128 column count: single full-width block, native [B, P, C] stores.
    x2, w2, b2 = _make(8, 24, 12, 20, k2)
    out2 = jax.block_until_ready(nlinear_forward_pallas(x2, w2, b2))
    ref2 = nlinear_reference(x2, w2, b2)
    assert out2.shape == (8, 12, 20)
    assert jnp.allclose(out2, ref2, atol=1e-5, rtol=1e-5), "mismatch vs reference (2)"

    # Multi-block "parallel" grid with a partial (masked) last batch block.
    x3, w3, b3 = _make(40, 32, 16, 4, k3)
    out3 = jax.block_until_ready(nlinear_forward_pallas(x3, w3, b3))
    ref3 = nlinear_reference(x3, w3, b3)
    assert out3.shape == (40, 16, 4)
    assert jnp.allclose(out3, ref3, atol=1e-5, rtol=1e-5), "mismatch vs reference (3)"

    print("KERNEL_OK")
</pallas_src>

<mosaic_0001>
module attributes {stable_mosaic.version = 11 : i64} {
  func.func @_nlinear_kernel(%arg0: i32, %arg1: memref<8x8xf32, #tpu.memory_space<vmem>>, %arg2: memref<4x8xf32, #tpu.memory_space<vmem>>, %arg3: memref<4x1xf32, #tpu.memory_space<vmem>>, %arg4: memref<4x1xf32, #tpu.memory_space<vmem>>, %arg5: memref<2x4x4xf32, #tpu.memory_space<vmem>>) attributes {dimension_semantics = [#tpu.dimension_semantics<parallel>], iteration_bounds = array<i64: 1>, scalar_prefetch = 0 : i64, scratch_operands = 0 : i64, tpu.core_type = #tpu.core_type<tc>, window_params = [{transform_indices = @transform_0, window_bounds = array<i64: 8, 8>}, {pipeline_mode = #tpu.pipeline_mode<synchronous>, transform_indices = @transform_1, window_bounds = array<i64: 4, 8>}, {pipeline_mode = #tpu.pipeline_mode<synchronous>, transform_indices = @transform_2, window_bounds = array<i64: 4, 1>}, {pipeline_mode = #tpu.pipeline_mode<synchronous>, transform_indices = @transform_3, window_bounds = array<i64: 4, 1>}, {transform_indices = @transform_4, window_bounds = array<i64: 2, 4, 4>}]} {
    %c0 = arith.constant 0 : index
    %c0_0 = arith.constant 0 : index
    %0 = vector.load %arg1[%c0, %c0_0] : memref<8x8xf32, #tpu.memory_space<vmem>>, vector<8x8xf32>
    %1 = vector.extract_strided_slice %0 {offsets = [7, 0], sizes = [1, 8], strides = [1, 1]} : vector<8x8xf32> to vector<1x8xf32>
    %c0_1 = arith.constant 0 : index
    %c0_2 = arith.constant 0 : index
    %2 = vector.load %arg2[%c0_1, %c0_2] : memref<4x8xf32, #tpu.memory_space<vmem>>, vector<4x8xf32>
    %cst = arith.constant dense<0.000000e+00> : vector<4x8xf32>
    %3 = tpu.matmul %2, %0, %cst {dimension_numbers = #tpu.dot_dimension_numbers<[1], [0], [0], [1], [0, 0, 1, 1], [], []>} : vector<4x8xf32>, vector<8x8xf32>, vector<4x8xf32> -> vector<4x8xf32>
    %c0_3 = arith.constant 0 : index
    %c0_4 = arith.constant 0 : index
    %4 = vector.load %arg3[%c0_3, %c0_4] : memref<4x1xf32, #tpu.memory_space<vmem>>, vector<4x1xf32>
    %5 = vector.broadcast %4 : vector<4x1xf32> to vector<4x8xf32>
    %6 = arith.addf %3, %5 : vector<4x8xf32>
    %c0_5 = arith.constant 0 : index
    %c0_6 = arith.constant 0 : index
    %7 = vector.load %arg4[%c0_5, %c0_6] : memref<4x1xf32, #tpu.memory_space<vmem>>, vector<4x1xf32>
    %8 = vector.broadcast %7 : vector<4x1xf32> to vector<4x8xf32>
    %9 = vector.broadcast %1 : vector<1x8xf32> to vector<4x8xf32>
    %10 = arith.mulf %8, %9 : vector<4x8xf32>
    %11 = arith.addf %6, %10 : vector<4x8xf32>
    %12 = vector.extract_strided_slice %11 {offsets = [0, 0], sizes = [4, 4], strides = [1, 1]} : vector<4x8xf32> to vector<4x4xf32>
    %c0_7 = arith.constant 0 : index
    %c0_8 = arith.constant 0 : index
    %c0_9 = arith.constant 0 : index
    %13 = vector.load %arg5[%c0_7, %c0_8, %c0_9] : memref<2x4x4xf32, #tpu.memory_space<vmem>>, vector<1x4x4xf32>
    %14 = vector.shape_cast %13 : vector<1x4x4xf32> to vector<4x4xf32>
    %15 = vector.shape_cast %12 : vector<4x4xf32> to vector<1x4x4xf32>
    tpu.vector_store %arg5[%c0_7, %c0_8, %c0_9], %15 {strides = array<i32>} : memref<2x4x4xf32, #tpu.memory_space<vmem>>, vector<1x4x4xf32>,
    %16 = vector.extract_strided_slice %11 {offsets = [0, 4], sizes = [4, 4], strides = [1, 1]} : vector<4x8xf32> to vector<4x4xf32>
    %c1 = arith.constant 1 : index
    %c0_10 = arith.constant 0 : index
    %c0_11 = arith.constant 0 : index
    %17 = vector.load %arg5[%c1, %c0_10, %c0_11] : memref<2x4x4xf32, #tpu.memory_space<vmem>>, vector<1x4x4xf32>
    %18 = vector.shape_cast %17 : vector<1x4x4xf32> to vector<4x4xf32>
    %19 = vector.shape_cast %16 : vector<4x4xf32> to vector<1x4x4xf32>
    tpu.vector_store %arg5[%c1, %c0_10, %c0_11], %19 {strides = array<i32>} : memref<2x4x4xf32, #tpu.memory_space<vmem>>, vector<1x4x4xf32>,
    return
  }
  func.func @transform_0(%arg0: i32) -> (i32, i32) {
    %c0_i32 = arith.constant 0 : i32
    %c0_i32_0 = arith.constant 0 : i32
    return %c0_i32, %arg0 : i32, i32
  }
  func.func @transform_1(%arg0: i32) -> (i32, i32) {
    %c0_i32 = arith.constant 0 : i32
    %c0_i32_0 = arith.constant 0 : i32
    %c0_i32_1 = arith.constant 0 : i32
    return %c0_i32, %c0_i32_0 : i32, i32
  }
  func.func @transform_2(%arg0: i32) -> (i32, i32) {
    %c0_i32 = arith.constant 0 : i32
    %c0_i32_0 = arith.constant 0 : i32
    %c0_i32_1 = arith.constant 0 : i32
    return %c0_i32, %c0_i32_0 : i32, i32
  }
  func.func @transform_3(%arg0: i32) -> (i32, i32) {
    %c0_i32 = arith.constant 0 : i32
    %c0_i32_0 = arith.constant 0 : i32
    %c0_i32_1 = arith.constant 0 : i32
    return %c0_i32, %c0_i32_0 : i32, i32
  }
  func.func @transform_4(%arg0: i32) -> (i32, i32, i32) {
    %c0_i32 = arith.constant 0 : i32
    %c0_i32_0 = arith.constant 0 : i32
    %c0_i32_1 = arith.constant 0 : i32
    return %arg0, %c0_i32, %c0_i32_0 : i32, i32, i32
  }
}

</mosaic_0001>

<llo_original>
// kernel: tpu_custom_call.1
$region0: #{tpu_custom_call.1}
  #allocation0 [shape = 'u32[]', space=smem, size = 0x4, offset = 0x4, fixed_abs, tag = 'smem constant byte address 0x4 - core index']
  #allocation1 [shape = 'u32[144,128]{1,0:T(1,128)}', space=vmem, size = 0x12000, scoped, tag = 'internal scratch']
  %s0 = inlined_call_operand.vmem [shape: f32[8,8], index: 0, kind: input, shape index: {}]
  %s1 = inlined_call_operand.vmem [shape: f32[4,8], index: 1, kind: input, shape index: {}]
  %s2 = inlined_call_operand.vmem [shape: f32[4,1], index: 2, kind: input, shape index: {}]
  %s3 = inlined_call_operand.vmem [shape: f32[4,1], index: 3, kind: input, shape index: {}]
  %s4 = inlined_call_operand.hbm [shape: f32[2,4,4], index: 4, kind: output, shape index: {}]
  %s5 = sld [smem:[#allocation0]]
  $region26: #{tpu_custom_call.1} parent=0
    _
  %s7 = ssub.s32 1, %s5
  %s8 = scalar_select 0, %s7, %s5
  $region1: #{tpu_custom_call.1} parent=0
    #allocation2 [shape = 'u8[4096]{0}', space=vmem, size = 0x1000, scoped, tag = 'output window, operand 0, single buffered']
    #allocation3 [shape = 's32[1]{0}', space=sflag, size = 0x4, scoped, tag = 'scoped memory for tpu_custom_call.1']
    %9 = vsyncpa [#allocation3], 0
    // Predicated region
    $region2: #{tpu_custom_call.1} parent=1 // pred_check
      _
    $region3: #{tpu_custom_call.1} parent=1 // pred_check_branch
      %11 = sbr.rel (0) target = $region5
    $region4: #{tpu_custom_call.1} parent=1 // pred_region
      _
    $region5: #{tpu_custom_call.1} parent=1 // pred_fallthru
      _
    // Predicated region
    $region6: #{tpu_custom_call.1} parent=1 // pred_check
      _
    $region7: #{tpu_custom_call.1} parent=1 // pred_check_branch
      %13 = sbr.rel (0) target = $region9
    $region8: #{tpu_custom_call.1} parent=1 // pred_region
      _
    $region9: #{tpu_custom_call.1} parent=1 // pred_fallthru
      _
    // Predicated region
    $region10: #{tpu_custom_call.1} parent=1 // pred_check
      _
    $region11: #{tpu_custom_call.1} parent=1 // pred_check_branch
      %15 = sbr.rel (0) target = $region13
    $region12: #{tpu_custom_call.1} parent=1 // pred_region
      _
    $region13: #{tpu_custom_call.1} parent=1 // pred_fallthru
      _
    // Predicated region
    $region14: #{tpu_custom_call.1} parent=1 // pred_check
      _
    $region15: #{tpu_custom_call.1} parent=1 // pred_check_branch
      %17 = sbr.rel (0) target = $region17
    $region16: #{tpu_custom_call.1} parent=1 // pred_region
      _
    $region17: #{tpu_custom_call.1} parent=1 // pred_fallthru
      _
    %v18 = vld [vmem:[%s0] sm:$0xff]
    %v19 = vld [vmem:[%s1] sm:$0xf]
    %v20 = vld [vmem:[%s2] sm:$0xf]
    %22 = vset.pattern.permute.xlu0 0
    %23 = vperm.xlu0 %22, %v20
    %v24 = vpop.permute.xlu0 %23
    %vm26 = vcmask 64512
    %v28 = vsel %vm26, %v19, 0
    %30 = vmatprep.subr.mxu0 0.0
    %31 = vmatpush1.msra.mxu0 %v18
    %32 = vmatprep.subr.mxu0 0.0
    %33 = vmatpush1.msra.mxu0 0.0
    %34 = vmatprep.subr.mxu0 0.0
    %35 = vmatpush1.msra.mxu0 0.0
    %36 = vmatprep.subr.mxu0 0.0
    %37 = vmatpush1.msra.mxu0 0.0
    %38 = vmatprep.subr.mxu0 0.0
    %39 = vmatpush1.msra.mxu0 0.0
    %40 = vmatprep.subr.mxu0 0.0
    %41 = vmatpush1.msra.mxu0 0.0
    %42 = vmatprep.subr.mxu0 0.0
    %43 = vmatpush1.msra.mxu0 0.0
    %44 = vmatprep.subr.mxu0 0.0
    %45 = vmatpush1.msra.mxu0 0.0
    %46 = vmatprep.subr.mxu0 0.0
    %47 = vmatpush1.msra.mxu0 0.0
    %48 = vmatprep.subr.mxu0 0.0
    %49 = vmatpush1.msra.mxu0 0.0
    %50 = vmatprep.subr.mxu0 0.0
    %51 = vmatpush1.msra.mxu0 0.0
    %52 = vmatprep.subr.mxu0 0.0
    %53 = vmatpush1.msra.mxu0 0.0
    %54 = vmatprep.subr.mxu0 0.0
    %55 = vmatpush1.msra.mxu0 0.0
    %56 = vmatprep.subr.mxu0 0.0
    %57 = vmatpush1.msra.mxu0 0.0
    %58 = vmatprep.subr.mxu0 0.0
    %59 = vmatpush1.msra.mxu0 0.0
    %60 = vmatprep.subr.mxu0 0.0
    %61 = vmatpush1.msra.mxu0 0.0
    %62 = vmatprep.subr.mxu0 0.0
    %63 = vmatpush1.msra.mxu0 0.0
    %64 = vmatprep.subr.mxu0 0.0
    %65 = vmatpush1.msra.mxu0 0.0
    %66 = vmatprep.subr.mxu0 0.0
    %67 = vmatpush1.msra.mxu0 0.0
    %68 = vmatprep.subr.mxu0 0.0
    %69 = vmatpush1.msra.mxu0 0.0
    %70 = vmatprep.subr.mxu0 0.0
    %71 = vmatpush1.msra.mxu0 0.0
    %72 = vmatprep.subr.mxu0 0.0
    %73 = vmatpush1.msra.mxu0 0.0
    %74 = vmatprep.subr.mxu0 0.0
    %75 = vmatpush1.msra.mxu0 0.0
    %76 = vmatprep.subr.mxu0 0.0
    %77 = vmatpush1.msra.mxu0 0.0
    %78 = vmatprep.subr.mxu0 0.0
    %79 = vmatpush1.msra.mxu0 0.0
    %80 = vmatprep.subr.mxu0 0.0
    %81 = vmatpush1.msra.mxu0 0.0
    %82 = vmatprep.subr.mxu0 0.0
    %83 = vmatpush1.msra.mxu0 0.0
    %84 = vmatprep.subr.mxu0 0.0
    %85 = vmatpush1.msra.mxu0 0.0
    %86 = vmatprep.subr.mxu0 0.0
    %87 = vmatpush1.msra.mxu0 0.0
    %88 = vmatprep.subr.mxu0 0.0
    %89 = vmatpush1.msra.mxu0 0.0
    %90 = vmatprep.subr.mxu0 0.0
    %91 = vmatpush1.msra.mxu0 0.0
    %92 = vmatprep.subr.mxu0 0.0
    %93 = vmatpush1.msra.mxu0 0.0
    %94 = vmatprep.mubr.f32.mxu0 0.0
    %95 = vmatmul.mubr.f32.gmra.mrb[0].mxu0 %v28
    %v96 = vpop.f32.mrb[0].mxu0
    %v97 = vadd.f32 %v24, %v96
    %v98 = vpop.f32.mrb[0].mxu0
    %99 = vdwg.mxu0
    %v100 = vld [vmem:[%s3] sm:$0xf]
    %102 = vset.pattern.permute.xlu0 0
    %103 = vperm.xlu0 %102, %v100
    %v104 = vpop.permute.xlu0 %103
    %v106 = vlaneseq
    %v107 = vshrl.u32 %v106, 7
    %v108 = vsub.s32 7, %v107
    %v109 = vrot.slane %v18, %v108
    %v110 = vmul.f32 %v104, %v109
    %v111 = vadd.f32 %v97, %v110
    %vm112 = vcmask 27648
    %113 = vst.msk [vmem:[#allocation2] sm:$0xf] %vm112, %v111
    %115 = vrot.lane.b32.xlu0 %v111, 124
    %v116 = vpop.permute.xlu0 %115
    %s118 = scalar_lea.vmem [#allocation2], 4
    %119 = vst.msk [vmem:[%s118] sm:$0xf] %vm112, %v116
    // Predicated region
    $region18: #{tpu_custom_call.1} parent=1 // pred_check
      _
    $region19: #{tpu_custom_call.1} parent=1 // pred_check_branch
      %121 = sbr.rel (0) target = $region21
    $region20: #{tpu_custom_call.1} parent=1 // pred_region
      %s123 = ssub.s32 128, 128
      %124 = vsyncadd [#allocation3], %s123
      %s125 = sshll.u32 [#allocation2], 4
      %s126 = int_to_ptr.vmem [resolvable:$true] %s125
      %131 = dma.vmem_to_hbm [thread:$0]  %s126, 128, %s4, [#allocation3], 64, 64, 4
    $region21: #{tpu_custom_call.1} parent=1 // pred_fallthru
      _
    // Predicated region
    $region22: #{tpu_custom_call.1} parent=1 // pred_check
      _
    $region23: #{tpu_custom_call.1} parent=1 // pred_check_branch
      %133 = sbr.rel (0) target = $region25
    $region24: #{tpu_custom_call.1} parent=1 // pred_region
      %134 = dma.done [#allocation3], 128
    $region25: #{tpu_custom_call.1} parent=1 // pred_fallthru
      _
    %135 = vsyncpa [#allocation3], 1

</llo_original>
